<compile_context>
chip_gen: v6e
topology: v6e:2x2x1
jax: 0.10.0
libtpu: 0.0.40
codegen_flags: <defaults>
</compile_context>

<pallas_src>
import functools

import jax
import jax.numpy as jnp
import numpy as np
from jax.experimental import pallas as pl
from jax.experimental.pallas import tpu as pltpu

DELTA = 0.2
R = 0.01

_INT32_MIN = -(2 ** 31)          # Python int -> jaxpr literal (no captured constants)
_SIGN_MASK = 0x7FFFFFFF


def mmcl_kernel(targets_ref, inputs_ref, out_ref, *, delta, num_hard, bf16_inputs):
    logits = inputs_ref[...].astype(jnp.float32)             # (TM, N) compute in f32
    tm, n = logits.shape
    tgt = targets_ref[...]                                   # (TM, 1) int32
    lane = jax.lax.broadcasted_iota(jnp.int32, (tm, n), 1)   # column index
    pos_mask = lane == tgt                                   # one-hot positives

    # Positive term: exactly one positive per row -> mean((1 - pos)^2) == (1 - pos)^2.
    pos_val = jnp.sum(jnp.where(pos_mask, logits, 0.0), axis=1, keepdims=True)
    pos_term = (1.0 - pos_val) ** 2                          # (TM, 1)

    kf = float(num_hard)
    # bf16 inputs widened to f32 have zero low-16 bits -> search only bits 30..16.
    low_bit = 16 if bf16_inputs else 0
    # peel ~4 full-tile passes per hard negative vs. ~3 per searched bit.
    peel_cutoff = 8 if bf16_inputs else 16

    if num_hard <= peel_cutoff:
        # --- exact tie-batched top-k peel (static unroll, <= peel_cutoff iters) ---
        cur = jnp.where(pos_mask, -jnp.inf, logits)          # negatives only
        taken = jnp.zeros_like(pos_val)                      # (TM, 1) f32
        sq_sum = jnp.zeros_like(pos_val)
        for _ in range(num_hard):
            cur_max = jnp.max(cur, axis=1, keepdims=True)
            ties = cur == cur_max                            # all lanes at the max
            cnt = jnp.sum(ties.astype(jnp.float32), axis=1, keepdims=True)
            take = jnp.minimum(cnt, kf - taken)              # clamp last group to k
            sq_sum = sq_sum + jnp.where(take > 0.0,
                                        take * (1.0 + cur_max) ** 2, 0.0)
            taken = taken + take
            cur = jnp.where(ties, -jnp.inf, cur)             # knock out all ties
        hard_sum = sq_sum
    else:
        # --- branch-free k-th-order-statistic threshold search on sortable keys ---
        # (counts are f32: exact for N < 2**24; NaN inputs are out of scope.)
        bits = jax.lax.bitcast_convert_type(logits, jnp.int32)
        skey = bits ^ (jnp.right_shift(bits, 31) & _SIGN_MASK)   # monotonic int32 key
        skey = jnp.where(pos_mask, _INT32_MIN, skey)             # exclude positive lane

        cnt_hi = jnp.sum((skey >= 0).astype(jnp.float32), axis=1, keepdims=True)
        thr = jnp.where(cnt_hi >= kf, 0, _INT32_MIN).astype(jnp.int32)
        for p in range(30, low_bit - 1, -1):          # static unroll (31 or 15 passes)
            cand = thr + (1 << p)
            cnt = jnp.sum((skey >= cand).astype(jnp.float32), axis=1, keepdims=True)
            thr = jnp.where(cnt >= kf, cand, thr)
        if low_bit == 16:
            # bf16-origin keys: negative values have low16 == 0xFFFF, others 0x0000.
            thr = jnp.where(thr < 0, thr | 0xFFFF, thr)

        # Fused epilogue: one compare, squared term computed once, two reductions,
        # exact tie correction at the threshold value.
        one_plus_sq = (1.0 + logits) ** 2
        strict_f = (skey > thr).astype(jnp.float32)
        cnt_strict = jnp.sum(strict_f, axis=1, keepdims=True)
        sum_strict = jnp.sum(strict_f * one_plus_sq, axis=1, keepdims=True)
        thr_bits = thr ^ (jnp.right_shift(thr, 31) & _SIGN_MASK)
        thr_val = jax.lax.bitcast_convert_type(thr_bits, jnp.float32)
        hard_sum = sum_strict + (kf - cnt_strict) * (1.0 + thr_val) ** 2

    out_ref[...] = pos_term + delta * (hard_sum / kf)        # per-row losses


def _vmem_budgets():
    """Generation-aware budgets: (tile working-set budget, scoped vmem limit)."""
    cap = 64 * 1024 * 1024                       # conservative default (v7x physical)
    try:
        info = pltpu.get_tpu_info()
        cap = int(getattr(info, "vmem_capacity_bytes", cap)) or cap
    except Exception:
        pass
    cap = max(cap, 32 * 1024 * 1024)
    # ~3/4 of physical: 48 MiB on v7x (64 MiB), 96 MiB on v5e/v6e (128 MiB).
    vmem_limit = min(cap * 3 // 4, 100 * 1024 * 1024)
    # Leave headroom for double-buffered output, semaphores, compiler scratch.
    tile_budget = vmem_limit * 3 // 5
    return tile_budget, vmem_limit


def _sublane(dtype):
    return {4: 8, 2: 16, 1: 32}.get(jnp.dtype(dtype).itemsize, 8)


def _pick_tile_rows(m, n, dtype, tile_budget, max_tm=1024):
    """Largest dtype-aligned row tile that fits the budget AND keeps >= ~4 grid steps."""
    sub = _sublane(dtype)
    itemsize = jnp.dtype(dtype).itemsize
    # Double-buffered native-dtype input rows + ~6 live f32/i32 (TM, N) working copies
    # (f32 logits, sortable key, masks, squared temporaries) + 20% headroom.
    per_row = int(((2 * itemsize + 6 * 4) * n + 64) * 1.2)
    tm = max(sub, min(max_tm, tile_budget // max(per_row, 1)))
    tm -= tm % sub
    tm = max(sub, tm)
    # Cap TM so the row grid has >= ~4 steps (megacore sharding + DMA overlap).
    m_pad = -(-m // sub) * sub
    quarter = -(-(-(-m_pad // 4)) // sub) * sub
    return max(sub, min(tm, quarter))


def mmcl_loss(inputs, targets, delta=DELTA, r=R, block_m=None):
    m, n = inputs.shape
    num_hard = int(r * (n - 1))
    assert num_hard >= 1, "need at least 1 hard negative (increase N)"

    tile_budget, vmem_limit = _vmem_budgets()
    sub = _sublane(inputs.dtype)
    tm = int(block_m) if block_m is not None else _pick_tile_rows(
        m, n, inputs.dtype, tile_budget)
    assert tm >= 8 and tm % sub == 0, "row tile must be a dtype-aligned multiple of 8"

    num_tiles = int(pl.cdiv(m, tm))
    m_pad = num_tiles * tm
    if m_pad != m:
        # Pad rows; padded rows produce finite junk losses sliced off before the mean.
        inputs = jnp.pad(inputs, ((0, m_pad - m), (0, 0)))
        targets = jnp.pad(targets, ((0, m_pad - m),))
    targets2d = targets.astype(jnp.int32).reshape(m_pad, 1)

    is_bf16 = jnp.dtype(inputs.dtype) == jnp.dtype(jnp.bfloat16)
    kernel = functools.partial(mmcl_kernel, delta=float(delta),
                               num_hard=num_hard, bf16_inputs=bool(is_bf16))
    per_row = pl.pallas_call(
        kernel,
        out_shape=jax.ShapeDtypeStruct((m_pad, 1), jnp.float32),
        grid=(num_tiles,),
        in_specs=[
            pl.BlockSpec((tm, 1), lambda i: (i, 0)),   # targets
            pl.BlockSpec((tm, n), lambda i: (i, 0)),   # logits (native dtype)
        ],
        out_specs=pl.BlockSpec((tm, 1), lambda i: (i, 0)),
        compiler_params=pltpu.CompilerParams(
            dimension_semantics=("parallel",),
            vmem_limit_bytes=int(vmem_limit),
        ),
    )(targets2d, inputs)
    # Final mean outside the kernel (keeps the row axis purely parallel); drop padding.
    return jnp.mean(per_row[:m, 0])


def mmcl_reference(inputs, targets, delta=DELTA, r=R):
    """Pure numpy re-implementation of the PyTorch forward (default path)."""
    inputs = np.asarray(inputs).astype(np.float64)
    targets = np.asarray(targets)
    m, n = inputs.shape
    losses = []
    for i in range(m):
        logit = inputs[i]
        label = np.zeros(n)
        label[targets[i]] = 1.0
        pos = logit[label > 0.5]
        neg = logit[label < 0.5]
        num = int(r * neg.shape[0])
        hard = np.sort(neg)[::-1][:num]
        losses.append(np.mean((1.0 - pos) ** 2) + delta * np.mean((1.0 + hard) ** 2))
    return float(np.mean(losses))


if __name__ == "__main__":
    key = jax.random.PRNGKey(0)
    k1a, k1b, k2a, k2b, k3a, k3b = jax.random.split(key, 6)

    # Config 1: f32 small bank -> num_hard = 2 (tie-batched peel path); forced 8-row
    # tiles so the grid has 3 steps and the last tile exercises row padding (M=20).
    M1, N1 = 20, 256
    in1 = jax.random.uniform(k1a, (M1, N1), jnp.float32, -1.0, 1.0)
    tg1 = jax.random.randint(k1b, (M1,), 0, N1, dtype=jnp.int32)
    loss1 = jax.block_until_ready(mmcl_loss(in1, tg1, block_m=8))
    ref1 = mmcl_reference(in1, tg1)
    assert np.allclose(float(loss1), ref1, rtol=1e-5, atol=1e-5), (float(loss1), ref1)

    # Config 2: f32 larger bank -> num_hard = 20 (31-bit threshold-search path).
    M2, N2 = 16, 2048
    in2 = jax.random.uniform(k2a, (M2, N2), jnp.float32, -1.0, 1.0)
    tg2 = jax.random.randint(k2b, (M2,), 0, N2, dtype=jnp.int32)
    loss2 = jax.block_until_ready(mmcl_loss(in2, tg2))
    ref2 = mmcl_reference(in2, tg2)
    assert np.allclose(float(loss2), ref2, rtol=1e-5, atol=1e-5), (float(loss2), ref2)

    # Config 3: bf16 bank -> num_hard = 10 (15-bit bf16 threshold-search path),
    # 16-row sublane-aligned tiles + row padding (M=24 -> 32).
    M3, N3 = 24, 1024
    in3 = jax.random.uniform(k3a, (M3, N3), jnp.bfloat16, -1.0, 1.0)
    tg3 = jax.random.randint(k3b, (M3,), 0, N3, dtype=jnp.int32)
    loss3 = jax.block_until_ready(mmcl_loss(in3, tg3))
    ref3 = mmcl_reference(in3, tg3)
    assert np.allclose(float(loss3), ref3, rtol=1e-4, atol=1e-4), (float(loss3), ref3)

    print("KERNEL_OK")
</pallas_src>

<mosaic_0001>
module attributes {stable_mosaic.version = 11 : i64} {
  func.func @mmcl_kernel(%arg0: i32, %arg1: memref<8x1xi32, #tpu.memory_space<vmem>>, %arg2: memref<8x256xf32, #tpu.memory_space<vmem>>, %arg3: memref<8x1xf32, #tpu.memory_space<vmem>>) attributes {dimension_semantics = [#tpu.dimension_semantics<parallel>], iteration_bounds = array<i64: 3>, scalar_prefetch = 0 : i64, scratch_operands = 0 : i64, tpu.core_type = #tpu.core_type<tc>, window_params = [{transform_indices = @transform_0, window_bounds = array<i64: 8, 1>}, {transform_indices = @transform_1, window_bounds = array<i64: 8, 256>}, {transform_indices = @transform_2, window_bounds = array<i64: 8, 1>}]} {
    %c0 = arith.constant 0 : index
    %c0_0 = arith.constant 0 : index
    %0 = vector.load %arg2[%c0, %c0_0] : memref<8x256xf32, #tpu.memory_space<vmem>>, vector<8x256xf32>
    %c0_1 = arith.constant 0 : index
    %c0_2 = arith.constant 0 : index
    %1 = vector.load %arg1[%c0_1, %c0_2] : memref<8x1xi32, #tpu.memory_space<vmem>>, vector<8x1xi32>
    %2 = tpu.iota {dimensions = array<i32: 1>} : vector<8x256xi32>
    %3 = vector.broadcast %1 : vector<8x1xi32> to vector<8x256xi32>
    %4 = arith.cmpi eq, %2, %3 : vector<8x256xi32>
    %cst = arith.constant 0.000000e+00 : f32
    %5 = vector.broadcast %cst : f32 to vector<8x256xf32>
    %6 = arith.select %4, %0, %5 : vector<8x256xi1>, vector<8x256xf32>
    %cst_3 = arith.constant dense<0.000000e+00> : vector<8xf32>
    %7 = vector.multi_reduction <add>, %6, %cst_3 [1] : vector<8x256xf32> to vector<8xf32>
    %8 = vector.shape_cast %7 : vector<8xf32> to vector<8x1xf32>
    %cst_4 = arith.constant 1.000000e+00 : f32
    %9 = vector.broadcast %cst_4 : f32 to vector<8x1xf32>
    %10 = arith.subf %9, %8 : vector<8x1xf32>
    %11 = arith.mulf %10, %10 : vector<8x1xf32>
    %cst_5 = arith.constant 0xFF800000 : f32
    %12 = vector.broadcast %cst_5 : f32 to vector<8x256xf32>
    %13 = arith.select %4, %12, %0 : vector<8x256xi1>, vector<8x256xf32>
    %cst_6 = arith.constant 0.000000e+00 : f32
    %14 = vector.broadcast %cst_6 : f32 to vector<8x1xf32>
    %cst_7 = arith.constant 0.000000e+00 : f32
    %15 = vector.broadcast %cst_7 : f32 to vector<8x1xf32>
    %cst_8 = arith.constant dense<0xFF800000> : vector<8xf32>
    %16 = vector.multi_reduction <maximumf>, %13, %cst_8 [1] : vector<8x256xf32> to vector<8xf32>
    %17 = vector.shape_cast %16 : vector<8xf32> to vector<8x1xf32>
    %18 = vector.broadcast %17 : vector<8x1xf32> to vector<8x256xf32>
    %19 = arith.cmpf oeq, %13, %18 : vector<8x256xf32>
    %20 = arith.extui %19 : vector<8x256xi1> to vector<8x256xi32>
    %21 = arith.sitofp %20 : vector<8x256xi32> to vector<8x256xf32>
    %cst_9 = arith.constant dense<0.000000e+00> : vector<8xf32>
    %22 = vector.multi_reduction <add>, %21, %cst_9 [1] : vector<8x256xf32> to vector<8xf32>
    %23 = vector.shape_cast %22 : vector<8xf32> to vector<8x1xf32>
    %cst_10 = arith.constant 2.000000e+00 : f32
    %24 = vector.broadcast %cst_10 : f32 to vector<8x1xf32>
    %25 = arith.subf %24, %14 : vector<8x1xf32>
    %26 = arith.minimumf %23, %25 : vector<8x1xf32>
    %cst_11 = arith.constant 0.000000e+00 : f32
    %27 = vector.broadcast %cst_11 : f32 to vector<8x1xf32>
    %28 = arith.cmpf ogt, %26, %27 : vector<8x1xf32>
    %cst_12 = arith.constant 1.000000e+00 : f32
    %29 = vector.broadcast %cst_12 : f32 to vector<8x1xf32>
    %30 = arith.addf %29, %17 : vector<8x1xf32>
    %31 = arith.mulf %30, %30 : vector<8x1xf32>
    %32 = arith.mulf %26, %31 : vector<8x1xf32>
    %cst_13 = arith.constant 0.000000e+00 : f32
    %33 = vector.broadcast %cst_13 : f32 to vector<8x1xf32>
    %34 = arith.select %28, %32, %33 : vector<8x1xi1>, vector<8x1xf32>
    %35 = arith.addf %15, %34 : vector<8x1xf32>
    %36 = arith.addf %14, %26 : vector<8x1xf32>
    %cst_14 = arith.constant 0xFF800000 : f32
    %37 = vector.broadcast %cst_14 : f32 to vector<8x256xf32>
    %38 = arith.select %19, %37, %13 : vector<8x256xi1>, vector<8x256xf32>
    %cst_15 = arith.constant dense<0xFF800000> : vector<8xf32>
    %39 = vector.multi_reduction <maximumf>, %38, %cst_15 [1] : vector<8x256xf32> to vector<8xf32>
    %40 = vector.shape_cast %39 : vector<8xf32> to vector<8x1xf32>
    %41 = vector.broadcast %40 : vector<8x1xf32> to vector<8x256xf32>
    %42 = arith.cmpf oeq, %38, %41 : vector<8x256xf32>
    %43 = arith.extui %42 : vector<8x256xi1> to vector<8x256xi32>
    %44 = arith.sitofp %43 : vector<8x256xi32> to vector<8x256xf32>
    %cst_16 = arith.constant dense<0.000000e+00> : vector<8xf32>
    %45 = vector.multi_reduction <add>, %44, %cst_16 [1] : vector<8x256xf32> to vector<8xf32>
    %46 = vector.shape_cast %45 : vector<8xf32> to vector<8x1xf32>
    %cst_17 = arith.constant 2.000000e+00 : f32
    %47 = vector.broadcast %cst_17 : f32 to vector<8x1xf32>
    %48 = arith.subf %47, %36 : vector<8x1xf32>
    %49 = arith.minimumf %46, %48 : vector<8x1xf32>
    %cst_18 = arith.constant 0.000000e+00 : f32
    %50 = vector.broadcast %cst_18 : f32 to vector<8x1xf32>
    %51 = arith.cmpf ogt, %49, %50 : vector<8x1xf32>
    %cst_19 = arith.constant 1.000000e+00 : f32
    %52 = vector.broadcast %cst_19 : f32 to vector<8x1xf32>
    %53 = arith.addf %52, %40 : vector<8x1xf32>
    %54 = arith.mulf %53, %53 : vector<8x1xf32>
    %55 = arith.mulf %49, %54 : vector<8x1xf32>
    %cst_20 = arith.constant 0.000000e+00 : f32
    %56 = vector.broadcast %cst_20 : f32 to vector<8x1xf32>
    %57 = arith.select %51, %55, %56 : vector<8x1xi1>, vector<8x1xf32>
    %58 = arith.addf %35, %57 : vector<8x1xf32>
    %cst_21 = arith.constant 2.000000e+00 : f32
    %59 = vector.broadcast %cst_21 : f32 to vector<8x1xf32>
    %60 = arith.divf %58, %59 : vector<8x1xf32>
    %cst_22 = arith.constant 2.000000e-01 : f32
    %61 = vector.broadcast %cst_22 : f32 to vector<8x1xf32>
    %62 = arith.mulf %61, %60 : vector<8x1xf32>
    %63 = arith.addf %11, %62 : vector<8x1xf32>
    %c0_23 = arith.constant 0 : index
    %c0_24 = arith.constant 0 : index
    %64 = vector.load %arg3[%c0_23, %c0_24] : memref<8x1xf32, #tpu.memory_space<vmem>>, vector<8x1xf32>
    tpu.vector_store %arg3[%c0_23, %c0_24], %63 {strides = array<i32>} : memref<8x1xf32, #tpu.memory_space<vmem>>, vector<8x1xf32>,
    return
  }
  func.func @transform_0(%arg0: i32) -> (i32, i32) {
    %c0_i32 = arith.constant 0 : i32
    %c0_i32_0 = arith.constant 0 : i32
    return %arg0, %c0_i32 : i32, i32
  }
  func.func @transform_1(%arg0: i32) -> (i32, i32) {
    %c0_i32 = arith.constant 0 : i32
    %c0_i32_0 = arith.constant 0 : i32
    return %arg0, %c0_i32 : i32, i32
  }
  func.func @transform_2(%arg0: i32) -> (i32, i32) {
    %c0_i32 = arith.constant 0 : i32
    %c0_i32_0 = arith.constant 0 : i32
    return %arg0, %c0_i32 : i32, i32
  }
}

</mosaic_0001>

<llo_original>
// kernel: tpu_custom_call.1
$region0: #{tpu_custom_call.1}
  #allocation0 [shape = 'u32[]', space=smem, size = 0x4, offset = 0x4, fixed_abs, tag = 'smem constant byte address 0x4 - core index']
  #allocation1 [shape = 'u32[144,128]{1,0:T(1,128)}', space=vmem, size = 0x12000, scoped, tag = 'internal scratch']
  %s0 = inlined_call_operand.vmem [shape: s32[24,1], index: 0, kind: input, shape index: {}]
  %s1 = inlined_call_operand.hbm [shape: f32[24,256], index: 1, kind: input, shape index: {}]
  %s2 = inlined_call_operand.vmem [shape: f32[24,1], index: 2, kind: output, shape index: {}]
  %s3 = sld [smem:[#allocation0]]
  $region45: #{tpu_custom_call.1} parent=0
    _
  %s5 = ssub.s32 1, %s3
  %s6 = scalar_select 0, %s5, %s3
  $region1: #{tpu_custom_call.1} parent=0
    #allocation2 [shape = 'u8[16384]{0}', space=vmem, size = 0x4000, scoped, tag = 'input window, operand 1']
    #allocation3 [shape = 's32[2]{0}', space=sflag, size = 0x8, scoped, tag = 'scoped memory for tpu_custom_call.1']
    %7 = vsyncpa [#allocation3], 0
    %s8 = scalar_lea.sflag [#allocation3], 1
    %9 = vsyncpa %s8, 0
    loop: start=0, step=1, limit=5
    $region2: #{tpu_custom_call.1} parent=1 // loop_pre_header
      _
    $region3: #{tpu_custom_call.1} parent=1 // loop_header
      %s11 = sphi 0, %s15
      %p12 = scmp.ge.s32.totalorder %s11, 5
      %s21 = sphi 0, %s23
      %s24 = sphi 0, %s21
      %s25 = sphi 0, %s24
      %s41 = sphi 0, %s25
      %s47 = sphi 0, %s49
      %s50 = sphi 0, %s47
      %s51 = sphi 0, %s50
      %s67 = sphi 0, %s51
      %s73 = sphi 0, %s75
      %s76 = sphi 0, %s73
      %s77 = sphi 0, %s76
      %s93 = sphi 0, %s77
    $region4: #{tpu_custom_call.1} parent=1 // loop_header_branch
      %14 = sbr.rel (%p12) target = $region8
    $region5: #{tpu_custom_call.1} parent=1 // loop_body
      %s16 = ssub.s32 %s11, 1
      %s17 = ssub.s32 %s11, 2
      %s18 = sadd.s32 %s11, 1
      %s19 = ssub.s32 %s11, %s18
      %p20 = scmp.eq.s32.totalorder %s19, 0
      %s22 = sadd.s32 %s21, 1
      %s23 = scalar_select %p20, %s21, %s22
      %p26 = pneg %p20
      %p27 = scmp.eq.s32.totalorder %s11, 2
      %p28 = por %p26, %p27
      %p29 = scmp.ne.s32.totalorder %s21, %s24
      %p30 = scmp.eq.s32.totalorder %s11, 0
      %p31 = por %p29, %p30
      %p32 = scmp.ne.s32.totalorder %s21, %s24
      %p33 = scmp.eq.s32.totalorder %s16, 2
      %p34 = por %p32, %p33
      %p35 = scmp.ne.s32.totalorder %s24, %s25
      %p36 = scmp.eq.s32.totalorder %s16, 0
      %p37 = por %p35, %p36
      %p38 = scmp.ne.s32.totalorder %s24, %s25
      %p39 = scmp.eq.s32.totalorder %s17, 2
      %p40 = por %p38, %p39
      %p42 = scmp.ne.s32.totalorder %s25, %s41
      %p43 = scmp.eq.s32.totalorder %s17, 0
      %p44 = por %p42, %p43
      %s45 = ssub.s32 %s11, %s18
      %p46 = scmp.eq.s32.totalorder %s45, 0
      %s48 = sadd.s32 %s47, 1
      %s49 = scalar_select %p46, %s47, %s48
      %p52 = pneg %p46
      %p53 = scmp.eq.s32.totalorder %s11, 2
      %p54 = por %p52, %p53
      %p55 = scmp.ne.s32.totalorder %s47, %s50
      %p56 = scmp.eq.s32.totalorder %s11, 0
      %p57 = por %p55, %p56
      %p58 = scmp.ne.s32.totalorder %s47, %s50
      %p59 = scmp.eq.s32.totalorder %s16, 2
      %p60 = por %p58, %p59
      %p61 = scmp.ne.s32.totalorder %s50, %s51
      %p62 = scmp.eq.s32.totalorder %s16, 0
      %p63 = por %p61, %p62
      %p64 = scmp.ne.s32.totalorder %s50, %s51
      %p65 = scmp.eq.s32.totalorder %s17, 2
      %p66 = por %p64, %p65
      %p68 = scmp.ne.s32.totalorder %s51, %s67
      %p69 = scmp.eq.s32.totalorder %s17, 0
      %p70 = por %p68, %p69
      %s71 = ssub.s32 %s11, %s18
      %p72 = scmp.eq.s32.totalorder %s71, 0
      %s74 = sadd.s32 %s73, 1
      %s75 = scalar_select %p72, %s73, %s74
      %p78 = pneg %p72
      %p79 = scmp.eq.s32.totalorder %s11, 2
      %p80 = por %p78, %p79
      %p81 = scmp.ne.s32.totalorder %s73, %s76
      %p82 = scmp.eq.s32.totalorder %s11, 0
      %p83 = por %p81, %p82
      %p84 = scmp.ne.s32.totalorder %s73, %s76
      %p85 = scmp.eq.s32.totalorder %s16, 2
      %p86 = por %p84, %p85
      %p87 = scmp.ne.s32.totalorder %s76, %s77
      %p88 = scmp.eq.s32.totalorder %s16, 0
      %p89 = por %p87, %p88
      %p90 = scmp.ne.s32.totalorder %s76, %s77
      %p91 = scmp.eq.s32.totalorder %s17, 2
      %p92 = por %p90, %p91
      %p94 = scmp.ne.s32.totalorder %s77, %s93
      %p95 = scmp.eq.s32.totalorder %s17, 0
      %p96 = por %p94, %p95
      %p97 = scmp.le.s32.totalorder 1, %s11
      %p98 = scmp.lt.s32.totalorder %s11, 4
      %p99 = pnand %p97, %p98
      %p100 = pneg %p99
      // Predicated region
      $region9: #{tpu_custom_call.1} parent=5 // pred_check
        _
      $region10: #{tpu_custom_call.1} parent=5 // pred_check_branch
        %102 = sbr.rel (%p99) target = $region12
      $region11: #{tpu_custom_call.1} parent=5 // pred_region
        %s103 = ssub.s32 %s11, 1
      $region12: #{tpu_custom_call.1} parent=5 // pred_fallthru
        _
      %p104 = scmp.lt.s32.totalorder %s11, 3
      // Predicated region
      $region13: #{tpu_custom_call.1} parent=5 // pred_check
        %p105 = pneg %p104
      $region14: #{tpu_custom_call.1} parent=5 // pred_check_branch
        %107 = sbr.rel (%p105) target = $region16
      $region15: #{tpu_custom_call.1} parent=5 // pred_region
        // Predicated region
        $region17: #{tpu_custom_call.1} parent=15 // pred_check
          %p108 = pneg %p31
        $region18: #{tpu_custom_call.1} parent=15 // pred_check_branch
          %110 = sbr.rel (%p108) target = $region20
        $region19: #{tpu_custom_call.1} parent=15 // pred_region
          %p111 = scmp.lt.s32.totalorder %s11, 2
          %s112 = scalar_select %p111, %s11, 2
          %s113 = smul.addr %s112, 8
          %s114 = scalar_lea.vmem %s0, %s113
        $region20: #{tpu_custom_call.1} parent=15 // pred_fallthru
          _
        // Predicated region
        $region21: #{tpu_custom_call.1} parent=15 // pred_check
          %p115 = pneg %p57
        $region22: #{tpu_custom_call.1} parent=15 // pred_check_branch
          %117 = sbr.rel (%p115) target = $region24
        $region23: #{tpu_custom_call.1} parent=15 // pred_region
          %s118 = sand.u32 %s47, 1
          %s119 = scalar_lea.sflag [#allocation3], %s118
          %s120 = sand.u32 %s47, 1
          %s121 = smul.addr %s120, 16
          %s122 = scalar_lea.vmem [#allocation2], %s121
          %s124 = ssub.s32 256, 256
          %125 = vsyncadd %s119, %s124
          %s126 = smul.addr %s11, 2
          %s127 = smul.addr %s126, 128
          %s128 = scalar_lea.hbm %s1, %s127
          %s130 = sshll.u32 %s122, 4
          %s131 = int_to_ptr.vmem [resolvable:$true] %s130
          %133 = dma.hbm_to_vmem [thread:$0]  %s128, 256, %s131, %s119
        $region24: #{tpu_custom_call.1} parent=15 // pred_fallthru
          _
      $region16: #{tpu_custom_call.1} parent=5 // pred_fallthru
        _
      %p134 = scmp.le.s32.totalorder 1, %s11
      %p135 = scmp.lt.s32.totalorder %s11, 4
      %p136 = pnand %p134, %p135
      %p137 = pneg %p136
      // Predicated region
      $region25: #{tpu_custom_call.1} parent=5 // pred_check
        _
      $region26: #{tpu_custom_call.1} parent=5 // pred_check_branch
        %139 = sbr.rel (%p136) target = $region28
      $region27: #{tpu_custom_call.1} parent=5 // pred_region
        %s140 = ssub.s32 %s11, 1
        %s141 = sand.u32 %s50, 1
        %s142 = scalar_lea.sflag [#allocation3], %s141
        %s143 = sand.u32 %s50, 1
        %s144 = smul.addr %s143, 16
        %s145 = scalar_lea.vmem [#allocation2], %s144
        // Predicated region
        $region29: #{tpu_custom_call.1} parent=27 // pred_check
          %p146 = pneg %p63
        $region30: #{tpu_custom_call.1} parent=27 // pred_check_branch
          %148 = sbr.rel (%p146) target = $region32
        $region31: #{tpu_custom_call.1} parent=27 // pred_region
          %149 = dma.done %s142, 256
        $region32: #{tpu_custom_call.1} parent=27 // pred_fallthru
          _
        %p150 = scmp.lt.s32.totalorder %s16, 2
        %s151 = scalar_select %p150, %s16, 2
        %s152 = smul.addr %s151, 8
        %s153 = scalar_lea.vmem %s0, %s152
        %p154 = pneg %p37
        %p155 = pneg %p34
        %s156 = sand.u32 %s50, 1
        %s157 = scalar_lea.sflag [#allocation3], %s156
        %s158 = sand.u32 %s50, 1
        %s159 = smul.addr %s158, 16
        %s160 = scalar_lea.vmem [#allocation2], %s159
        %p161 = pneg %p63
        %p162 = pneg %p60
        %p163 = pneg %p89
        %p164 = pneg %p86
        %p165 = scmp.lt.s32.totalorder %s16, 2
        %s166 = scalar_select %p165, %s16, 2
        %s167 = smul.addr %s166, 8
        %s168 = scalar_lea.vmem %s2, %s167
        %p169 = scmp.lt.s32.totalorder %s16, 2
        %s170 = scalar_select %p169, %s16, 2
        %s171 = smul.addr %s170, 8
        %s172 = scalar_lea.vmem %s0, %s171
        %p173 = scmp.lt.s32.totalorder %s16, 2
        %s174 = scalar_select %p173, %s16, 2
        %s175 = smul.addr %s174, 8
        %s176 = scalar_lea.vmem %s2, %s175
        %v177 = vld [vmem:[%s145] sm:$0xff]
        %v178 = vld [vmem:[%s145 + $0x8] sm:$0xff]
        %v179 = vld [vmem:[%s172] sm:$0xff]
        %v180 = vlaneseq
        %v181 = vand.u32 %v180, 127
        %v182 = vadd.s32 %v181, 128
        %183 = vset.pattern.permute.xlu0 0
        %184 = vperm.xlu0 %183, %v179
        %v185 = vpop.permute.xlu0 %184
        %vm186 = vcmp.eq.s32.totalorder %v181, %v185
        %vm187 = vcmp.eq.s32.totalorder %v182, %v185
        %v188 = vsel %vm186, %v177, 0.0
        %v189 = vsel %vm187, %v178, 0.0
        %v190 = vadd.f32 %v188, %v189
        %191 = vadd.xlane.f32.xlu0 %v190
        %v192 = vpop.xlane.xlu0 %191
        %v193 = vsub.f32 1.0, %v192
        %v194 = vmul.f32 %v193, %v193
        %v195 = vsel %vm186, -inf, %v177
        %v196 = vsel %vm187, -inf, %v178
        %v197 = vmax.f32 %v195, %v196
        %198 = vmax.xlane.f32.xlu0 %v197
        %v199 = vpop.xlane.xlu0 %198
        %vm200 = vcmp.eq.f32.partialorder %v195, %v199
        %vm201 = vcmp.eq.f32.partialorder %v196, %v199
        %v202 = vsel %vm200, 1, 0
        %v203 = vsel %vm201, 1, 0
        %v204 = vcvt.s32.f32 %v202
        %v205 = vcvt.s32.f32 %v203
        %v206 = vadd.f32 %v204, %v205
        %207 = vadd.xlane.f32.xlu0 %v206
        %v208 = vpop.xlane.xlu0 %207
        %v209 = vmin.f32 %v208, 2.0
        %vm210 = vcmp.gt.f32.partialorder %v209, 0.0
        %v211 = vadd.f32 %v199, 1.0
        %v212 = vmul.f32 %v211, %v211
        %v213 = vmul.f32 %v209, %v212
        %v214 = vsel %vm210, %v213, 0.0
        %v215 = vadd.f32 %v214, 0.0
        %v216 = vadd.f32 %v209, 0.0
        %v217 = vsel %vm200, -inf, %v195
        %v218 = vsel %vm201, -inf, %v196
        %v219 = vmax.f32 %v217, %v218
        %220 = vmax.xlane.f32.xlu0 %v219
        %v221 = vpop.xlane.xlu0 %220
        %vm222 = vcmp.eq.f32.partialorder %v217, %v221
        %vm223 = vcmp.eq.f32.partialorder %v218, %v221
        %v224 = vsel %vm222, 1, 0
        %v225 = vsel %vm223, 1, 0
        %v226 = vcvt.s32.f32 %v224
        %v227 = vcvt.s32.f32 %v225
        %v228 = vadd.f32 %v226, %v227
        %229 = vadd.xlane.f32.xlu0 %v228
        %v230 = vpop.xlane.xlu0 %229
        %v231 = vsub.f32 2.0, %v216
        %v232 = vmin.f32 %v230, %v231
        %vm233 = vcmp.gt.f32.partialorder %v232, 0.0
        %v234 = vadd.f32 %v221, 1.0
        %v235 = vmul.f32 %v234, %v234
        %v236 = vmul.f32 %v232, %v235
        %v237 = vsel %vm233, %v236, 0.0
        %v238 = vadd.f32 %v215, %v237
        %v239 = vrcp.pop 2.0
        %v240 = vmul.f32 %v238, %v239
        %v241 = vmul.f32 %v240, 0.2
        %v242 = vadd.f32 %v194, %v241
        %vm243 = vcmask 7168
        %244 = vst.msk [vmem:[%s176] sm:$0xff] %vm243, %v242
        %p245 = scmp.lt.s32.totalorder %s16, 2
        %s246 = scalar_select %p245, %s16, 2
        %s247 = smul.addr %s246, 8
        %s248 = scalar_lea.vmem %s2, %s247
        // Predicated region
        $region33: #{tpu_custom_call.1} parent=27 // pred_check
          %p249 = pneg %p86
        $region34: #{tpu_custom_call.1} parent=27 // pred_check_branch
          %251 = sbr.rel (%p249) target = $region36
        $region35: #{tpu_custom_call.1} parent=27 // pred_region
          _
        $region36: #{tpu_custom_call.1} parent=27 // pred_fallthru
          _
      $region28: #{tpu_custom_call.1} parent=5 // pred_fallthru
        _
      %p252 = scmp.le.s32.totalorder 2, %s11
      // Predicated region
      $region37: #{tpu_custom_call.1} parent=5 // pred_check
        %p253 = pneg %p252
      $region38: #{tpu_custom_call.1} parent=5 // pred_check_branch
        %255 = sbr.rel (%p253) target = $region40
      $region39: #{tpu_custom_call.1} parent=5 // pred_region
        %s256 = ssub.s32 %s11, 2
        // Predicated region
        $region41: #{tpu_custom_call.1} parent=39 // pred_check
          %p257 = pneg %p92
        $region42: #{tpu_custom_call.1} parent=39 // pred_check_branch
          %259 = sbr.rel (%p257) target = $region44
        $region43: #{tpu_custom_call.1} parent=39 // pred_region
          %p260 = scmp.lt.s32.totalorder %s17, 2
          %s261 = scalar_select %p260, %s17, 2
          %s262 = smul.addr %s261, 8
          %s263 = scalar_lea.vmem %s2, %s262
        $region44: #{tpu_custom_call.1} parent=39 // pred_fallthru
          _
      $region40: #{tpu_custom_call.1} parent=5 // pred_fallthru
        _
    $region6: #{tpu_custom_call.1} parent=1 // loop_footer
      %s15 = sadd.s32 1, %s11
    $region7: #{tpu_custom_call.1} parent=1 // loop_footer_branch
      %10 = sbr.rel target = $region3
    $region8: #{tpu_custom_call.1} parent=1 // loop_exit
      _
    %264 = vsyncpa [#allocation3], 1
    %s265 = scalar_lea.sflag [#allocation3], 1
    %266 = vsyncpa %s265, 1

</llo_original>
